<compile_context>
chip_gen: v7x
topology: tpu7x:2x2x1
jax: 0.10.0
libtpu: 0.0.40
codegen_flags: <defaults>
</compile_context>

<pallas_src>
import functools
import math

import numpy as np
import jax
import jax.numpy as jnp
from jax.experimental import pallas as pl
from jax.experimental.pallas import tpu as pltpu


def _round_up(v, m):
    return ((v + m - 1) // m) * m


def _sigmoid(v):
    return 1.0 / (1.0 + np.exp(-np.asarray(v, np.float64)))


def _num_lag_weights(decay_max, buffer, T):
    """torch: num_weights = min(ceil(log(0.01, decay_max)) + 1, 100); the conv
    kernel has num_weights + buffer taps; taps at lag >= T only ever touch the
    zero padding, so the used lag count is min(num_weights + buffer, T)."""
    num_w = min(math.ceil(math.log(0.01, float(decay_max))) + 1, 100)
    return min(num_w + buffer, T)


# ----------------------------------------------------------------------------
# Pallas kernel
# ----------------------------------------------------------------------------
def _make_kernel(*, tile_t, Wsz, WD, HALO, GPAD, N, NNp, M, buffer,
                 k_chunks, j_chunks, use_bf16):
    f32 = jnp.float32
    mx_dt = jnp.bfloat16 if use_bf16 else jnp.float32

    def kernel(x_hbm, beta_ref, alpha_ref, wconst_ref, corbar_ref, dbar_ref,
               wband_ref, p1_ref, p2_ref, scal_ref, out_ref, xbuf, sem):
        i = pl.program_id(0)
        row0 = pl.multiple_of(i * tile_t, tile_t)

        # ---- windowed DMA of x: O(Wsz*N) VMEM regardless of T ---------------
        cp = pltpu.make_async_copy(x_hbm.at[pl.ds(row0, Wsz)], xbuf, sem)
        cp.start()
        cp.wait()
        xw = xbuf[...]                                    # (Wsz, N)
        x2 = xw * xw

        # ---- univariate GARCH WMA via log-doubling of geometric weights -----
        # P_m[t] = sum_{e=0}^{m-1} beta^e * x2[t-e];  acc[t] = P_M[t-buffer].
        # pltpu.roll wraparound only contaminates rows t < Lg-1 <= GPAD, which
        # are never consumed (asserted host-side).
        if M <= 0:
            acc = jnp.zeros_like(x2)
        else:
            beta = beta_ref[...]                          # (1, N)
            kmax = M.bit_length() - 1
            pw = [beta]                                   # pw[k] = beta**(2**k)
            Ds = [x2]                                     # Ds[k] = P_{2**k}
            for k in range(kmax):
                Ds.append(Ds[k] + pw[k] * pltpu.roll(Ds[k], shift=1 << k, axis=0))
                pw.append(pw[k] * pw[k])

            def beta_pow(n):                              # beta**n, static n > 0
                r, j = None, 0
                while n:
                    if n & 1:
                        r = pw[j] if r is None else r * pw[j]
                    n >>= 1
                    j += 1
                return r

            res, alen = None, 0
            for k in range(kmax, -1, -1):                 # binary decomposition of M
                if (M >> k) & 1:
                    if res is None:
                        res, alen = Ds[k], 1 << k
                    else:
                        res = res + beta_pow(alen) * pltpu.roll(Ds[k], shift=alen, axis=0)
                        alen += 1 << k
            acc = pltpu.roll(res, shift=buffer, axis=0)

        var = wconst_ref[...] + alpha_ref[...] * acc      # (Wsz, N), > 0
        inv_sigma = jax.lax.rsqrt(var)                    # EUP
        zt = xw * inv_sigma                               # standardized returns
        # sigma = var * rsqrt(var)  (no second EUP sqrt)
        sigma_out = var[HALO:, :] * inv_sigma[HALO:, :]   # (tile_t, N)

        # ---- DCC pipeline on the trimmed window (dead GARCH-halo rows cut) --
        zt_t = zt[GPAD:, :]                               # (WD, N)
        a_dcc = scal_ref[0]
        w_dcc = scal_ref[1]

        wb_mx = [wband_ref[:, s:s + c].astype(mx_dt) for (s, c) in k_chunks]
        zt_chunks = [zt_t[s:s + c, :] for (s, c) in k_chunks]
        zt_mx = [z.astype(mx_dt) for z in zt_chunks]

        # diag(cor) straight from zt (zz[:, n*N+n] == zt[:, n]**2): K = WD << NNp
        dacc = jnp.zeros((tile_t, N), f32)
        for wb_c, zt_c in zip(wb_mx, zt_chunks):
            dacc = dacc + jnp.dot(wb_c, (zt_c * zt_c).astype(mx_dt),
                                  preferred_element_type=f32)
        diag = w_dcc * dbar_ref[...] + a_dcc * dacc       # (tile_t, N)
        # fused cov2cor + cor2cov scale:  out = cor * (ratio@p1) * (ratio@p2)
        ratio = sigma_out * jax.lax.rsqrt(diag)           # (tile_t, N)
        ratio_mx = ratio.astype(mx_dt)

        # lane (NNp) chunks keep live intermediates bounded and stores lane-dense
        for (j0, jc) in j_chunks:
            p1j = p1_ref[:, j0:j0 + jc].astype(mx_dt)     # (N, jc) 0/1 selectors
            p2j = p2_ref[:, j0:j0 + jc].astype(mx_dt)
            acc2 = jnp.zeros((tile_t, jc), f32)
            for wb_c, zt_c in zip(wb_mx, zt_mx):
                zi = jnp.dot(zt_c, p1j, preferred_element_type=f32)   # (c, jc)
                zj = jnp.dot(zt_c, p2j, preferred_element_type=f32)
                acc2 = acc2 + jnp.dot(wb_c, (zi * zj).astype(mx_dt),
                                      preferred_element_type=f32)
            cor = w_dcc * corbar_ref[:, j0:j0 + jc] + a_dcc * acc2    # (tile_t, jc)
            ri = jnp.dot(ratio_mx, p1j, preferred_element_type=f32)
            rj = jnp.dot(ratio_mx, p2j, preferred_element_type=f32)
            out_ref[:, j0:j0 + jc] = cor * ri * rj

    return kernel


# ----------------------------------------------------------------------------
# cached structural constants (glue, not compute)
# ----------------------------------------------------------------------------
@functools.lru_cache(maxsize=None)
def _selectors(N, NNp):
    q = np.arange(NNp)
    row = np.arange(N)
    valid = q < N * N
    p1 = ((q[None, :] // N == row[:, None]) & valid[None, :]).astype(np.float32)
    p2 = ((q[None, :] % N == row[:, None]) & valid[None, :]).astype(np.float32)
    return p1, p2                                          # (N, NNp) each


@functools.lru_cache(maxsize=None)
def _banded_weights(tile_t, WD, DHALO, Ld, buffer, b_dcc):
    # Wband[a, v] = wd[DHALO + a - v], wd[lag] = 0 for lag < buffer,
    #               b_dcc**(lag-buffer) for buffer <= lag < Ld, else 0.
    lag = DHALO + np.arange(tile_t)[:, None] - np.arange(WD)[None, :]
    w = np.where((lag >= buffer) & (lag < Ld),
                 np.power(float(b_dcc), np.clip(lag - buffer, 0, None)), 0.0)
    return w.astype(np.float32)                            # (tile_t, WD)


# ----------------------------------------------------------------------------
# forward pass wrapper (mirrors GarchDCCNetNNL.forward)
# ----------------------------------------------------------------------------
def garch_dcc_covariance(x, alpha_raw, beta_raw, omega_raw, a_raw, b_raw,
                         cor_mat_bar, *, buffer=1, n_ahead=1,
                         tile_t=256, k_chunk=256, nnp_chunk=2048,
                         use_bf16_matmul=False):
    """GarchDCCNetNNL.forward: (T, N) returns -> (T, N, N) conditional covariances.

    tile_t guidance: 512-1024 on v5e/v6e (128 MiB VMEM), 128-256 on v7x (64 MiB/TC).
    """
    T, N = x.shape
    NN = N * N
    NNp = _round_up(max(NN, 128), 128)

    # ---- host-side scalar/parameter setup (mirrors torch's .item() logic) ----
    alpha = _sigmoid(alpha_raw).reshape(1, N)
    beta = _sigmoid(beta_raw).reshape(1, N) * 0.9999
    omega = _sigmoid(omega_raw).reshape(N)
    omega2 = omega ** 2
    wconst = omega2[None, :] / (1.0 - beta)
    if n_ahead > 1:                          # fold GARCH n_ahead reweighting
        a_b = np.clip(alpha + beta, 0.0, 0.99)
        co2 = (1.0 / n_ahead) * (1.0 - a_b ** n_ahead) / (1.0 - a_b)
        co1 = (1.0 - co2) / (1.0 - a_b)
        wconst_eff = co1 * omega2[None, :] + co2 * wconst
        alpha_eff = co2 * alpha
    else:
        wconst_eff, alpha_eff = wconst, alpha
    Lg = _num_lag_weights(beta.max(), buffer, T)

    a_dcc = float(_sigmoid(a_raw).reshape(-1)[0])
    b_dcc = float(_sigmoid(b_raw).reshape(-1)[0]) * 0.99
    a_b_s = a_dcc + b_dcc
    w_dcc = 0.01 if a_b_s > 1.0 else (1.0 - a_b_s) / (1.0 - b_dcc)
    if n_ahead > 1:                          # fold DCC n_ahead reweighting
        ab_c = min(max(a_b_s, 0.0), 0.99)
        co2 = (1.0 / n_ahead) * (1.0 - ab_c ** n_ahead) / (1.0 - ab_c)
        co1 = 1.0 - co2
        w_eff, a_eff = co1 + co2 * w_dcc, co2 * a_dcc
    else:
        w_eff, a_eff = w_dcc, a_dcc
    Ld = _num_lag_weights(b_dcc, buffer, T)

    # ---- tiling ----
    tile_t = max(8, min(_round_up(int(tile_t), 8), _round_up(T, 8)))
    nt = -(-T // tile_t)
    T_pad = nt * tile_t
    GPAD = _round_up(max(Lg - 1, 0), 8)      # GARCH history / roll-contamination bound
    DHALO = _round_up(max(Ld - 1, 0), 8)     # DCC history kept in the trimmed window
    HALO = GPAD + DHALO
    Wsz = tile_t + HALO
    WD = tile_t + DHALO
    # roll wraparound must stay inside the never-consumed leading-halo rows
    assert GPAD >= Lg - 1 and HALO - DHALO >= Lg - 1

    k_chunks, s = [], 0
    while s < WD:
        c = min(int(k_chunk), WD - s)
        k_chunks.append((s, c))
        s += c
    nnp_chunk = _round_up(max(128, min(int(nnp_chunk), NNp)), 128)
    j_chunks, s = [], 0
    while s < NNp:
        c = min(nnp_chunk, NNp - s)
        j_chunks.append((s, c))
        s += c

    # ---- constants (cached per configuration) ----
    p1_np, p2_np = _selectors(N, NNp)
    wband_np = _banded_weights(tile_t, WD, DHALO, Ld, buffer, b_dcc)

    corbar = np.asarray(cor_mat_bar, np.float64).reshape(N, N)
    corbar_p = np.zeros((1, NNp), np.float32)
    corbar_p[0, :NN] = corbar.reshape(-1).astype(np.float32)
    dbar = np.ascontiguousarray(np.diag(corbar)).reshape(1, N).astype(np.float32)

    # ---- device-side padding of x (front halo zeros == conv1d zero padding) --
    x_dev = jnp.asarray(x, jnp.float32)
    x_pad = jnp.pad(x_dev, ((HALO, T_pad - T), (0, 0)))

    kernel = _make_kernel(tile_t=tile_t, Wsz=Wsz, WD=WD, HALO=HALO, GPAD=GPAD,
                          N=N, NNp=NNp, M=Lg - buffer, buffer=buffer,
                          k_chunks=tuple(k_chunks), j_chunks=tuple(j_chunks),
                          use_bf16=use_bf16_matmul)

    def resident(shape):                                   # constant index_map
        return pl.BlockSpec(shape, lambda i: (0, 0))

    flops_tile = (2 * 2 * WD * N * NNp                     # zi, zj broadcasts
                  + 2 * tile_t * WD * NNp                  # banded DCC matmul
                  + 2 * tile_t * WD * N                    # diag from zt
                  + 2 * 2 * tile_t * N * NNp               # ri, rj broadcasts
                  + 6 * Wsz * N * (2 * max(Lg - buffer, 1).bit_length()))
    cost = pl.CostEstimate(
        flops=int(nt * flops_tile),
        transcendentals=int(nt * (Wsz * N + tile_t * N)),
        bytes_accessed=int(4 * ((HALO + T_pad) * N + T_pad * NNp + wband_np.size
                                + 2 * N * NNp + NNp + 5 * N)),
    )

    out_flat = pl.pallas_call(
        kernel,
        out_shape=jax.ShapeDtypeStruct((T_pad, NNp), jnp.float32),
        grid=(nt,),
        in_specs=[
            pl.BlockSpec(memory_space=pl.ANY),             # x (HBM; windowed DMA)
            resident((1, N)),                              # beta (effective)
            resident((1, N)),                              # alpha (effective)
            resident((1, N)),                              # wconst (effective)
            resident((1, NNp)),                            # cor_mat_bar (flat, padded)
            resident((1, N)),                              # diag(cor_mat_bar)
            resident((tile_t, WD)),                        # banded DCC weights (trimmed)
            resident((N, NNp)),                            # p1 selector
            resident((N, NNp)),                            # p2 selector
            pl.BlockSpec(memory_space=pltpu.MemorySpace.SMEM),   # (a_dcc, w_dcc)
        ],
        out_specs=pl.BlockSpec((tile_t, NNp), lambda i: (i, 0)),
        scratch_shapes=[pltpu.VMEM((Wsz, N), jnp.float32),       # x window buffer
                        pltpu.SemaphoreType.DMA],
        compiler_params=pltpu.CompilerParams(
            dimension_semantics=("parallel",),             # halo'd tiles are independent
            vmem_limit_bytes=48 * 1024 * 1024,             # safe on v7x's 64 MiB/TC
        ),
        cost_estimate=cost,
    )(
        x_pad,
        jnp.asarray(beta, jnp.float32),
        jnp.asarray(alpha_eff, jnp.float32),
        jnp.asarray(wconst_eff, jnp.float32),
        jnp.asarray(corbar_p),
        jnp.asarray(dbar),
        jnp.asarray(wband_np),
        jnp.asarray(p1_np), jnp.asarray(p2_np),
        jnp.asarray(np.array([a_eff, w_eff], np.float32)),
    )
    return out_flat[:T, :NN].reshape(T, N, N)


# ----------------------------------------------------------------------------
# pure-numpy reference of the same math (torch layout), for validation
# ----------------------------------------------------------------------------
def _torch_layout_weights(decay, n_cols, buffer):
    decay = np.asarray(decay, np.float64).reshape(1, -1)
    if decay.shape[1] != n_cols:
        decay = np.tile(decay, (1, n_cols))
    num_w = min(math.ceil(math.log(0.01, float(decay.max()))) + 1, 100)
    w = decay ** np.arange(num_w)[:, None]
    return np.concatenate([w[::-1], np.zeros((buffer, n_cols))], axis=0)


def _ref_wma(xm, wfull):
    T = xm.shape[0]
    W = wfull.shape[0]
    out = np.zeros_like(xm)
    for j in range(min(W, T)):
        out[j:, :] += wfull[W - 1 - j] * xm[:T - j, :]
    return out


def _reference(x, alpha, beta, omega, a_s, b_s, corbar, buffer=1):
    x = np.asarray(x, np.float64)
    T, N = x.shape
    wconst = (1.0 / (1.0 - beta)) * omega ** 2
    a_ma = _ref_wma(x * x, _torch_layout_weights(beta, N, buffer))
    sigma = np.sqrt(wconst + alpha * a_ma)
    zt = x / sigma
    zz = np.einsum("ti,tj->tij", zt, zt).reshape(T, N * N)
    b_eff = b_s * 0.99
    a_b = a_s + b_eff
    w = 0.01 if a_b > 1.0 else (1.0 - a_b) / (1.0 - b_eff)
    zz_ma = _ref_wma(zz, _torch_layout_weights(np.array([b_eff]), N * N, buffer))
    cor = (w * np.asarray(corbar, np.float64).reshape(1, N * N) + a_s * zz_ma
           ).reshape(T, N, N)
    diag = np.einsum("tii->ti", cor)
    cor_n = cor / np.sqrt(diag[:, :, None] * diag[:, None, :])
    return cor_n * sigma[:, :, None] * sigma[:, None, :]


if __name__ == "__main__":
    T, N = 16, 8
    buffer, n_ahead = 1, 1                      # module defaults

    key = jax.random.PRNGKey(0)
    k_x, k_a, k_b, k_o, k_da, k_db = jax.random.split(key, 6)

    x = (0.1 * jax.random.normal(k_x, (T, N))).astype(jnp.float32)
    x_np = np.asarray(x, np.float64)

    def uni(k, shape, lo, hi):
        return np.asarray(jax.random.uniform(k, shape, minval=lo, maxval=hi),
                          dtype=np.float64)

    # raw (pre-sigmoid) parameters, same distributions as the module __init__
    alpha_raw = uni(k_a, (1, N), -4.0, -2.0)
    beta_raw = uni(k_b, (1, N), 1.0, 3.0)
    omega_raw = uni(k_o, (N,), -3.0, -1.0)
    a_raw = uni(k_da, (1,), -4.0, -2.0)
    b_raw = uni(k_db, (1,), 2.0, 4.0)

    # cor_mat_bar = torch_cor(x, center=True), fixed at module init
    cov = x_np.T @ x_np / T
    mu = x_np.mean(axis=0, keepdims=True)
    cov = cov - mu.T @ mu
    dsd = np.sqrt(np.diag(cov))
    corbar = cov / np.outer(dsd, dsd)

    cov_mat = garch_dcc_covariance(x, alpha_raw, beta_raw, omega_raw, a_raw,
                                   b_raw, corbar, buffer=buffer, n_ahead=n_ahead)
    cov_mat = jax.block_until_ready(cov_mat)

    # numerical check against a pure-numpy float64 reference of the same math
    alpha_s = _sigmoid(alpha_raw)
    beta_s = _sigmoid(beta_raw) * 0.9999
    omega_s = _sigmoid(omega_raw)
    a_s = float(_sigmoid(a_raw)[0])
    b_s = float(_sigmoid(b_raw)[0])
    ref = _reference(x_np, alpha_s, beta_s, omega_s, a_s, b_s, corbar, buffer=buffer)

    got = np.asarray(cov_mat, np.float64)
    if not np.allclose(got, ref, rtol=2e-2, atol=1e-4):
        max_err = float(np.max(np.abs(got - ref)))
        raise AssertionError(f"kernel/reference mismatch, max abs err = {max_err}")

    print("KERNEL_OK")
</pallas_src>

<mosaic_0001>
module attributes {stable_mosaic.version = 11 : i64} {
  func.func @kernel(%arg0: i32, %arg1: memref<48x8xf32, #tpu.memory_space<any>>, %arg2: memref<1x8xf32, #tpu.memory_space<vmem>>, %arg3: memref<1x8xf32, #tpu.memory_space<vmem>>, %arg4: memref<1x8xf32, #tpu.memory_space<vmem>>, %arg5: memref<1x128xf32, #tpu.memory_space<vmem>>, %arg6: memref<1x8xf32, #tpu.memory_space<vmem>>, %arg7: memref<16x32xf32, #tpu.memory_space<vmem>>, %arg8: memref<8x128xf32, #tpu.memory_space<vmem>>, %arg9: memref<8x128xf32, #tpu.memory_space<vmem>>, %arg10: memref<2xf32, #tpu.memory_space<smem>>, %arg11: memref<16x128xf32, #tpu.memory_space<vmem>>, %arg12: memref<48x8xf32, #tpu.memory_space<vmem>>, %arg13: memref<!tpu.dma_semaphore, #tpu.memory_space<semaphore_mem>>) attributes {dimension_semantics = [#tpu.dimension_semantics<parallel>], iteration_bounds = array<i64: 1>, scalar_prefetch = 0 : i64, scratch_operands = 2 : i64, tpu.core_type = #tpu.core_type<tc>, window_params = [{}, {pipeline_mode = #tpu.pipeline_mode<synchronous>, transform_indices = @transform_1, window_bounds = array<i64: 1, 8>}, {pipeline_mode = #tpu.pipeline_mode<synchronous>, transform_indices = @transform_2, window_bounds = array<i64: 1, 8>}, {pipeline_mode = #tpu.pipeline_mode<synchronous>, transform_indices = @transform_3, window_bounds = array<i64: 1, 8>}, {pipeline_mode = #tpu.pipeline_mode<synchronous>, transform_indices = @transform_4, window_bounds = array<i64: 1, 128>}, {pipeline_mode = #tpu.pipeline_mode<synchronous>, transform_indices = @transform_5, window_bounds = array<i64: 1, 8>}, {pipeline_mode = #tpu.pipeline_mode<synchronous>, transform_indices = @transform_6, window_bounds = array<i64: 16, 32>}, {pipeline_mode = #tpu.pipeline_mode<synchronous>, transform_indices = @transform_7, window_bounds = array<i64: 8, 128>}, {pipeline_mode = #tpu.pipeline_mode<synchronous>, transform_indices = @transform_8, window_bounds = array<i64: 8, 128>}, {transform_indices = @transform_9, window_bounds = array<i64: 2>}, {transform_indices = @transform_10, window_bounds = array<i64: 16, 128>}]} {
    %c16_i32 = arith.constant 16 : i32
    %0 = arith.muli %arg0, %c16_i32 : i32
    %1 = tpu.assume_multiple %0, 16 : i32
    %c0_i32 = arith.constant 0 : i32
    %2 = tpu.memref_slice %arg1[%1, %c0_i32] : memref<48x8xf32, #tpu.memory_space<any>> -> memref<48x8xf32, #tpu.memory_space<any>>
    tpu.enqueue_dma source(%2 : memref<48x8xf32, #tpu.memory_space<any>>) target(%arg12 : memref<48x8xf32, #tpu.memory_space<vmem>>) target_semaphore(%arg13 : memref<!tpu.dma_semaphore, #tpu.memory_space<semaphore_mem>>)
    %c0_i32_0 = arith.constant 0 : i32
    %3 = tpu.memref_slice %arg1[%1, %c0_i32_0] : memref<48x8xf32, #tpu.memory_space<any>> -> memref<48x8xf32, #tpu.memory_space<any>>
    tpu.wait_dma2 semaphore(%arg13 : memref<!tpu.dma_semaphore, #tpu.memory_space<semaphore_mem>>) src(%3 : memref<48x8xf32, #tpu.memory_space<any>>) dst(%arg12 : memref<48x8xf32, #tpu.memory_space<vmem>>)
    %c0 = arith.constant 0 : index
    %c0_1 = arith.constant 0 : index
    %4 = vector.load %arg12[%c0, %c0_1] : memref<48x8xf32, #tpu.memory_space<vmem>>, vector<48x8xf32>
    %5 = arith.mulf %4, %4 : vector<48x8xf32>
    %c0_2 = arith.constant 0 : index
    %c0_3 = arith.constant 0 : index
    %6 = vector.load %arg2[%c0_2, %c0_3] : memref<1x8xf32, #tpu.memory_space<vmem>>, vector<1x8xf32>
    %c1_i32 = arith.constant 1 : i32
    %7 = tpu.dynamic_rotate %5 by %c1_i32 dim 0 : vector<48x8xf32>, i32 -> vector<48x8xf32>
    %8 = vector.broadcast %6 : vector<1x8xf32> to vector<48x8xf32>
    %9 = arith.mulf %8, %7 : vector<48x8xf32>
    %10 = arith.addf %5, %9 : vector<48x8xf32>
    %11 = arith.mulf %6, %6 : vector<1x8xf32>
    %c2_i32 = arith.constant 2 : i32
    %12 = tpu.dynamic_rotate %10 by %c2_i32 dim 0 : vector<48x8xf32>, i32 -> vector<48x8xf32>
    %13 = vector.broadcast %11 : vector<1x8xf32> to vector<48x8xf32>
    %14 = arith.mulf %13, %12 : vector<48x8xf32>
    %15 = arith.addf %10, %14 : vector<48x8xf32>
    %16 = arith.mulf %11, %11 : vector<1x8xf32>
    %c4_i32 = arith.constant 4 : i32
    %17 = tpu.dynamic_rotate %15 by %c4_i32 dim 0 : vector<48x8xf32>, i32 -> vector<48x8xf32>
    %18 = vector.broadcast %16 : vector<1x8xf32> to vector<48x8xf32>
    %19 = arith.mulf %18, %17 : vector<48x8xf32>
    %20 = arith.addf %15, %19 : vector<48x8xf32>
    %21 = arith.mulf %16, %16 : vector<1x8xf32>
    %c8_i32 = arith.constant 8 : i32
    %22 = tpu.dynamic_rotate %15 by %c8_i32 dim 0 : vector<48x8xf32>, i32 -> vector<48x8xf32>
    %23 = vector.broadcast %21 : vector<1x8xf32> to vector<48x8xf32>
    %24 = arith.mulf %23, %22 : vector<48x8xf32>
    %25 = arith.addf %20, %24 : vector<48x8xf32>
    %26 = arith.mulf %16, %21 : vector<1x8xf32>
    %c12_i32 = arith.constant 12 : i32
    %27 = tpu.dynamic_rotate %10 by %c12_i32 dim 0 : vector<48x8xf32>, i32 -> vector<48x8xf32>
    %28 = vector.broadcast %26 : vector<1x8xf32> to vector<48x8xf32>
    %29 = arith.mulf %28, %27 : vector<48x8xf32>
    %30 = arith.addf %25, %29 : vector<48x8xf32>
    %31 = arith.mulf %11, %16 : vector<1x8xf32>
    %32 = arith.mulf %31, %21 : vector<1x8xf32>
    %c14_i32 = arith.constant 14 : i32
    %33 = tpu.dynamic_rotate %5 by %c14_i32 dim 0 : vector<48x8xf32>, i32 -> vector<48x8xf32>
    %34 = vector.broadcast %32 : vector<1x8xf32> to vector<48x8xf32>
    %35 = arith.mulf %34, %33 : vector<48x8xf32>
    %36 = arith.addf %30, %35 : vector<48x8xf32>
    %c1_i32_4 = arith.constant 1 : i32
    %37 = tpu.dynamic_rotate %36 by %c1_i32_4 dim 0 : vector<48x8xf32>, i32 -> vector<48x8xf32>
    %c0_5 = arith.constant 0 : index
    %c0_6 = arith.constant 0 : index
    %38 = vector.load %arg4[%c0_5, %c0_6] : memref<1x8xf32, #tpu.memory_space<vmem>>, vector<1x8xf32>
    %c0_7 = arith.constant 0 : index
    %c0_8 = arith.constant 0 : index
    %39 = vector.load %arg3[%c0_7, %c0_8] : memref<1x8xf32, #tpu.memory_space<vmem>>, vector<1x8xf32>
    %40 = vector.broadcast %39 : vector<1x8xf32> to vector<48x8xf32>
    %41 = arith.mulf %40, %37 : vector<48x8xf32>
    %42 = vector.broadcast %38 : vector<1x8xf32> to vector<48x8xf32>
    %43 = arith.addf %42, %41 : vector<48x8xf32>
    %44 = math.rsqrt %43 : vector<48x8xf32>
    %45 = arith.mulf %4, %44 : vector<48x8xf32>
    %46 = vector.extract_strided_slice %43 {offsets = [32, 0], sizes = [16, 8], strides = [1, 1]} : vector<48x8xf32> to vector<16x8xf32>
    %47 = vector.extract_strided_slice %44 {offsets = [32, 0], sizes = [16, 8], strides = [1, 1]} : vector<48x8xf32> to vector<16x8xf32>
    %48 = arith.mulf %46, %47 : vector<16x8xf32>
    %49 = vector.extract_strided_slice %45 {offsets = [16, 0], sizes = [32, 8], strides = [1, 1]} : vector<48x8xf32> to vector<32x8xf32>
    %c0_9 = arith.constant 0 : index
    %50 = memref.load %arg10[%c0_9] : memref<2xf32, #tpu.memory_space<smem>>
    %c1 = arith.constant 1 : index
    %51 = memref.load %arg10[%c1] : memref<2xf32, #tpu.memory_space<smem>>
    %c0_10 = arith.constant 0 : index
    %c0_11 = arith.constant 0 : index
    %52 = vector.load %arg7[%c0_10, %c0_11] : memref<16x32xf32, #tpu.memory_space<vmem>>, vector<16x32xf32>
    %cst = arith.constant 0.000000e+00 : f32
    %53 = vector.broadcast %cst : f32 to vector<16x8xf32>
    %54 = arith.mulf %49, %49 : vector<32x8xf32>
    %cst_12 = arith.constant dense<0.000000e+00> : vector<16x8xf32>
    %55 = tpu.matmul %52, %54, %cst_12 {dimension_numbers = #tpu.dot_dimension_numbers<[1], [0], [0], [1], [0, 0, 1, 1], [], []>} : vector<16x32xf32>, vector<32x8xf32>, vector<16x8xf32> -> vector<16x8xf32>
    %56 = arith.addf %53, %55 : vector<16x8xf32>
    %c0_13 = arith.constant 0 : index
    %c0_14 = arith.constant 0 : index
    %57 = vector.load %arg6[%c0_13, %c0_14] : memref<1x8xf32, #tpu.memory_space<vmem>>, vector<1x8xf32>
    %58 = vector.broadcast %51 : f32 to vector<1x8xf32>
    %59 = arith.mulf %58, %57 : vector<1x8xf32>
    %60 = vector.broadcast %50 : f32 to vector<16x8xf32>
    %61 = arith.mulf %60, %56 : vector<16x8xf32>
    %62 = vector.broadcast %59 : vector<1x8xf32> to vector<16x8xf32>
    %63 = arith.addf %62, %61 : vector<16x8xf32>
    %64 = math.rsqrt %63 : vector<16x8xf32>
    %65 = arith.mulf %48, %64 : vector<16x8xf32>
    %c0_15 = arith.constant 0 : index
    %c0_16 = arith.constant 0 : index
    %66 = vector.load %arg8[%c0_15, %c0_16] : memref<8x128xf32, #tpu.memory_space<vmem>>, vector<8x128xf32>
    %c0_17 = arith.constant 0 : index
    %c0_18 = arith.constant 0 : index
    %67 = vector.load %arg9[%c0_17, %c0_18] : memref<8x128xf32, #tpu.memory_space<vmem>>, vector<8x128xf32>
    %cst_19 = arith.constant 0.000000e+00 : f32
    %68 = vector.broadcast %cst_19 : f32 to vector<16x128xf32>
    %cst_20 = arith.constant dense<0.000000e+00> : vector<32x128xf32>
    %69 = tpu.matmul %49, %66, %cst_20 {dimension_numbers = #tpu.dot_dimension_numbers<[1], [0], [0], [1], [0, 0, 1, 1], [], []>} : vector<32x8xf32>, vector<8x128xf32>, vector<32x128xf32> -> vector<32x128xf32>
    %cst_21 = arith.constant dense<0.000000e+00> : vector<32x128xf32>
    %70 = tpu.matmul %49, %67, %cst_21 {dimension_numbers = #tpu.dot_dimension_numbers<[1], [0], [0], [1], [0, 0, 1, 1], [], []>} : vector<32x8xf32>, vector<8x128xf32>, vector<32x128xf32> -> vector<32x128xf32>
    %71 = arith.mulf %69, %70 : vector<32x128xf32>
    %cst_22 = arith.constant dense<0.000000e+00> : vector<16x128xf32>
    %72 = tpu.matmul %52, %71, %cst_22 {dimension_numbers = #tpu.dot_dimension_numbers<[1], [0], [0], [1], [0, 0, 1, 1], [], []>} : vector<16x32xf32>, vector<32x128xf32>, vector<16x128xf32> -> vector<16x128xf32>
    %73 = arith.addf %68, %72 : vector<16x128xf32>
    %c0_23 = arith.constant 0 : index
    %c0_24 = arith.constant 0 : index
    %74 = vector.load %arg5[%c0_23, %c0_24] : memref<1x128xf32, #tpu.memory_space<vmem>>, vector<1x128xf32>
    %75 = vector.broadcast %51 : f32 to vector<1x128xf32>
    %76 = arith.mulf %75, %74 : vector<1x128xf32>
    %77 = vector.broadcast %50 : f32 to vector<16x128xf32>
    %78 = arith.mulf %77, %73 : vector<16x128xf32>
    %79 = vector.broadcast %76 : vector<1x128xf32> to vector<16x128xf32>
    %80 = arith.addf %79, %78 : vector<16x128xf32>
    %cst_25 = arith.constant dense<0.000000e+00> : vector<16x128xf32>
    %81 = tpu.matmul %65, %66, %cst_25 {dimension_numbers = #tpu.dot_dimension_numbers<[1], [0], [0], [1], [0, 0, 1, 1], [], []>} : vector<16x8xf32>, vector<8x128xf32>, vector<16x128xf32> -> vector<16x128xf32>
    %cst_26 = arith.constant dense<0.000000e+00> : vector<16x128xf32>
    %82 = tpu.matmul %65, %67, %cst_26 {dimension_numbers = #tpu.dot_dimension_numbers<[1], [0], [0], [1], [0, 0, 1, 1], [], []>} : vector<16x8xf32>, vector<8x128xf32>, vector<16x128xf32> -> vector<16x128xf32>
    %83 = arith.mulf %80, %81 : vector<16x128xf32>
    %84 = arith.mulf %83, %82 : vector<16x128xf32>
    %c0_27 = arith.constant 0 : index
    %c0_28 = arith.constant 0 : index
    %85 = vector.load %arg11[%c0_27, %c0_28] : memref<16x128xf32, #tpu.memory_space<vmem>>, vector<16x128xf32>
    tpu.vector_store %arg11[%c0_27, %c0_28], %84 {strides = array<i32>} : memref<16x128xf32, #tpu.memory_space<vmem>>, vector<16x128xf32>,
    return
  }
  func.func @transform_1(%arg0: i32) -> (i32, i32) {
    %c0_i32 = arith.constant 0 : i32
    %c0_i32_0 = arith.constant 0 : i32
    %c0_i32_1 = arith.constant 0 : i32
    return %c0_i32, %c0_i32_0 : i32, i32
  }
  func.func @transform_2(%arg0: i32) -> (i32, i32) {
    %c0_i32 = arith.constant 0 : i32
    %c0_i32_0 = arith.constant 0 : i32
    %c0_i32_1 = arith.constant 0 : i32
    return %c0_i32, %c0_i32_0 : i32, i32
  }
  func.func @transform_3(%arg0: i32) -> (i32, i32) {
    %c0_i32 = arith.constant 0 : i32
    %c0_i32_0 = arith.constant 0 : i32
    %c0_i32_1 = arith.constant 0 : i32
    return %c0_i32, %c0_i32_0 : i32, i32
  }
  func.func @transform_4(%arg0: i32) -> (i32, i32) {
    %c0_i32 = arith.constant 0 : i32
    %c0_i32_0 = arith.constant 0 : i32
    %c0_i32_1 = arith.constant 0 : i32
    return %c0_i32, %c0_i32_0 : i32, i32
  }
  func.func @transform_5(%arg0: i32) -> (i32, i32) {
    %c0_i32 = arith.constant 0 : i32
    %c0_i32_0 = arith.constant 0 : i32
    %c0_i32_1 = arith.constant 0 : i32
    return %c0_i32, %c0_i32_0 : i32, i32
  }
  func.func @transform_6(%arg0: i32) -> (i32, i32) {
    %c0_i32 = arith.constant 0 : i32
    %c0_i32_0 = arith.constant 0 : i32
    %c0_i32_1 = arith.constant 0 : i32
    return %c0_i32, %c0_i32_0 : i32, i32
  }
  func.func @transform_7(%arg0: i32) -> (i32, i32) {
    %c0_i32 = arith.constant 0 : i32
    %c0_i32_0 = arith.constant 0 : i32
    %c0_i32_1 = arith.constant 0 : i32
    return %c0_i32, %c0_i32_0 : i32, i32
  }
  func.func @transform_8(%arg0: i32) -> (i32, i32) {
    %c0_i32 = arith.constant 0 : i32
    %c0_i32_0 = arith.constant 0 : i32
    %c0_i32_1 = arith.constant 0 : i32
    return %c0_i32, %c0_i32_0 : i32, i32
  }
  func.func @transform_9(%arg0: i32) -> i32 {
    %c0_i32 = arith.constant 0 : i32
    %c0_i32_0 = arith.constant 0 : i32
    return %c0_i32 : i32
  }
  func.func @transform_10(%arg0: i32) -> (i32, i32) {
    %c0_i32 = arith.constant 0 : i32
    %c0_i32_0 = arith.constant 0 : i32
    return %arg0, %c0_i32 : i32, i32
  }
}

</mosaic_0001>

<llo_original>
// kernel: tpu_custom_call.1
$region0: #{tpu_custom_call.1}
  #allocation0 [shape = 'u32[]', space=smem, size = 0x4, offset = 0x4, fixed_abs, tag = 'smem constant byte address 0x4 - core index']
  #allocation1 [shape = 'u32[144,128]{1,0:T(1,128)}', space=vmem, size = 0x12000, scoped, tag = 'internal scratch']
  #allocation2 [shape = 'f32[48,8]{1,0:T(8,128)}', space=vmem, size = 0x6000, scoped, tag = 'scratch operand']
  #allocation3 [shape = 's32[1]{0}', space=sflag, size = 0x4, scoped, tag = 'scratch operand']
  #allocation8 [shape = 's32[]', space=sflag, size = 0x4, offset = 0, fixed_abs, tag = 'sflag constant byte address 0x0 - dummy sync flag']
  %s0 = inlined_call_operand.vmem [shape: f32[48,8], index: 0, kind: input, shape index: {}]
  %s1 = inlined_call_operand.vmem [shape: f32[1,8], index: 1, kind: input, shape index: {}]
  %s2 = inlined_call_operand.vmem [shape: f32[1,8], index: 2, kind: input, shape index: {}]
  %s3 = inlined_call_operand.vmem [shape: f32[1,8], index: 3, kind: input, shape index: {}]
  %s4 = inlined_call_operand.vmem [shape: f32[1,128], index: 4, kind: input, shape index: {}]
  %s5 = inlined_call_operand.vmem [shape: f32[1,8], index: 5, kind: input, shape index: {}]
  %s6 = inlined_call_operand.vmem [shape: f32[16,32], index: 6, kind: input, shape index: {}]
  %s7 = inlined_call_operand.vmem [shape: f32[8,128], index: 7, kind: input, shape index: {}]
  %s8 = inlined_call_operand.vmem [shape: f32[8,128], index: 8, kind: input, shape index: {}]
  %s9 = inlined_call_operand.vmem [shape: f32[2], index: 9, kind: input, shape index: {}]
  %s10 = inlined_call_operand.hbm [shape: f32[16,128], index: 10, kind: output, shape index: {}]
  %s11 = sld [smem:[#allocation0]]
  $region84: #{tpu_custom_call.1} parent=0
    _
  %s13 = ssub.s32 1, %s11
  %s14 = scalar_select 0, %s13, %s11
  $region1: #{tpu_custom_call.1} parent=0
    #allocation4 [shape = 'u8[512]{0}', space=smem, size = 0x200, scoped, tag = 'input window, operand 9, single buffered']
    #allocation5 [shape = 's32[1]{0}', space=sflag, size = 0x4, scoped, tag = 'scoped memory for tpu_custom_call.1']
    #allocation6 [shape = 's32[1]{0}', space=sflag, size = 0x4, scoped, tag = 'scoped memory for tpu_custom_call.1']
    #allocation7 [shape = 'u8[8192]{0}', space=vmem, size = 0x2000, scoped, tag = 'output window, operand 0, single buffered']
    %15 = vsyncpa [#allocation6], 0
    %16 = vsyncpa [#allocation5], 0
    // Predicated region
    $region2: #{tpu_custom_call.1} parent=1 // pred_check
      _
    $region3: #{tpu_custom_call.1} parent=1 // pred_check_branch
      %18 = sbr.rel (0) target = $region5
    $region4: #{tpu_custom_call.1} parent=1 // pred_region
      _
    $region5: #{tpu_custom_call.1} parent=1 // pred_fallthru
      _
    // Predicated region
    $region6: #{tpu_custom_call.1} parent=1 // pred_check
      _
    $region7: #{tpu_custom_call.1} parent=1 // pred_check_branch
      %20 = sbr.rel (0) target = $region9
    $region8: #{tpu_custom_call.1} parent=1 // pred_region
      _
    $region9: #{tpu_custom_call.1} parent=1 // pred_fallthru
      _
    // Predicated region
    $region10: #{tpu_custom_call.1} parent=1 // pred_check
      _
    $region11: #{tpu_custom_call.1} parent=1 // pred_check_branch
      %22 = sbr.rel (0) target = $region13
    $region12: #{tpu_custom_call.1} parent=1 // pred_region
      _
    $region13: #{tpu_custom_call.1} parent=1 // pred_fallthru
      _
    // Predicated region
    $region14: #{tpu_custom_call.1} parent=1 // pred_check
      _
    $region15: #{tpu_custom_call.1} parent=1 // pred_check_branch
      %24 = sbr.rel (0) target = $region17
    $region16: #{tpu_custom_call.1} parent=1 // pred_region
      _
    $region17: #{tpu_custom_call.1} parent=1 // pred_fallthru
      _
    // Predicated region
    $region18: #{tpu_custom_call.1} parent=1 // pred_check
      _
    $region19: #{tpu_custom_call.1} parent=1 // pred_check_branch
      %26 = sbr.rel (0) target = $region21
    $region20: #{tpu_custom_call.1} parent=1 // pred_region
      _
    $region21: #{tpu_custom_call.1} parent=1 // pred_fallthru
      _
    // Predicated region
    $region22: #{tpu_custom_call.1} parent=1 // pred_check
      _
    $region23: #{tpu_custom_call.1} parent=1 // pred_check_branch
      %28 = sbr.rel (0) target = $region25
    $region24: #{tpu_custom_call.1} parent=1 // pred_region
      _
    $region25: #{tpu_custom_call.1} parent=1 // pred_fallthru
      _
    // Predicated region
    $region26: #{tpu_custom_call.1} parent=1 // pred_check
      _
    $region27: #{tpu_custom_call.1} parent=1 // pred_check_branch
      %30 = sbr.rel (0) target = $region29
    $region28: #{tpu_custom_call.1} parent=1 // pred_region
      _
    $region29: #{tpu_custom_call.1} parent=1 // pred_fallthru
      _
    // Predicated region
    $region30: #{tpu_custom_call.1} parent=1 // pred_check
      _
    $region31: #{tpu_custom_call.1} parent=1 // pred_check_branch
      %32 = sbr.rel (0) target = $region33
    $region32: #{tpu_custom_call.1} parent=1 // pred_region
      _
    $region33: #{tpu_custom_call.1} parent=1 // pred_fallthru
      _
    // Predicated region
    $region34: #{tpu_custom_call.1} parent=1 // pred_check
      _
    $region35: #{tpu_custom_call.1} parent=1 // pred_check_branch
      %34 = sbr.rel (0) target = $region37
    $region36: #{tpu_custom_call.1} parent=1 // pred_region
      %s36 = ssub.s32 16, 16
      %37 = vsyncadd [#allocation6], %s36
      %s39 = sshll.u32 %s9, 4
      %s40 = int_to_ptr.vmem [resolvable:$true] %s39
      %42 = dma.vmem_to_smem %s40, 16, [#allocation4], [#allocation6]
    $region37: #{tpu_custom_call.1} parent=1 // pred_fallthru
      _
    // Predicated region
    $region38: #{tpu_custom_call.1} parent=1 // pred_check
      _
    $region39: #{tpu_custom_call.1} parent=1 // pred_check_branch
      %44 = sbr.rel (0) target = $region41
    $region40: #{tpu_custom_call.1} parent=1 // pred_region
      %45 = dma.done [#allocation6], 16
    $region41: #{tpu_custom_call.1} parent=1 // pred_fallthru
      _
    %46 = sfence
    %s47 = smul.u32 0, 16
    %s48 = scalar_lea.vmem %s0, %s47
    %p50 = scmp.lt.u32.totalorder 48, 8
    %p51 = pneg %p50
    // Predicated region
    $region42: #{tpu_custom_call.1} parent=1 // pred_check
      _
    $region43: #{tpu_custom_call.1} parent=1 // pred_check_branch
      %53 = sbr.rel (%p50) target = $region45
    $region44: #{tpu_custom_call.1} parent=1 // pred_region
      %s68 = sand.u32 48, 7
      %p69 = scmp.eq.s32.totalorder %s68, 0
      // Predicated region
      $region57: #{tpu_custom_call.1} parent=44 // pred_check
        %p70 = pneg %p69
      $region58: #{tpu_custom_call.1} parent=44 // pred_check_branch
        %72 = sbr.rel (%p70) target = $region60
      $region59: #{tpu_custom_call.1} parent=44 // pred_region
        loop: start=0, step=1, limit=1
        $region61: #{tpu_custom_call.1} parent=59 // loop_pre_header
          _
        $region62: #{tpu_custom_call.1} parent=59 // loop_header
          %s74 = sphi 0, %s78
          %p75 = scmp.ge.s32.totalorder %s74, 1
          %s79 = sphi %s48, %s48
          %s80 = sphi [#allocation2], [#allocation2]
        $region63: #{tpu_custom_call.1} parent=59 // loop_header_branch
          %77 = sbr.rel (%p75) target = $region67
        $region64: #{tpu_custom_call.1} parent=59 // loop_body
          %v81 = vld [vmem:[%s79] sm:$0xff]
          %82 = vst [vmem:[%s80] sm:$0xff] %v81
          %v83 = vld [vmem:[%s79 + $0x8] sm:$0xff]
          %84 = vst [vmem:[%s80 + $0x8] sm:$0xff] %v83
          %v85 = vld [vmem:[%s79 + $0x10] sm:$0xff]
          %86 = vst [vmem:[%s80 + $0x10] sm:$0xff] %v85
          %v87 = vld [vmem:[%s79 + $0x18] sm:$0xff]
          %88 = vst [vmem:[%s80 + $0x18] sm:$0xff] %v87
          %v89 = vld [vmem:[%s79 + $0x20] sm:$0xff]
          %90 = vst [vmem:[%s80 + $0x20] sm:$0xff] %v89
          %v91 = vld [vmem:[%s79 + $0x28] sm:$0xff]
          %92 = vst [vmem:[%s80 + $0x28] sm:$0xff] %v91
        $region65: #{tpu_custom_call.1} parent=59 // loop_footer
          %s78 = sadd.s32 1, %s74
        $region66: #{tpu_custom_call.1} parent=59 // loop_footer_branch
          %73 = sbr.rel target = $region62
        $region67: #{tpu_custom_call.1} parent=59 // loop_exit
          _
      $region60: #{tpu_custom_call.1} parent=44 // pred_fallthru
        _
      %p93 = pneg %p69
      // Predicated region
      $region68: #{tpu_custom_call.1} parent=44 // pred_check
        _
      $region69: #{tpu_custom_call.1} parent=44 // pred_check_branch
        %95 = sbr.rel (%p69) target = $region71
      $region70: #{tpu_custom_call.1} parent=44 // pred_region
        %s96 = sand.u32 48, 7
      $region71: #{tpu_custom_call.1} parent=44 // pred_fallthru
        _
    $region45: #{tpu_custom_call.1} parent=1 // pred_fallthru
      _
    // Predicated region
    $region46: #{tpu_custom_call.1} parent=1 // pred_check
      %p54 = pneg %p50
    $region47: #{tpu_custom_call.1} parent=1 // pred_check_branch
      %56 = sbr.rel (%p54) target = $region49
    $region48: #{tpu_custom_call.1} parent=1 // pred_region
      %s57 = sshllo.u32 0, 48
      loop: start=0, step=1, limit=1
      $region50: #{tpu_custom_call.1} parent=48 // loop_pre_header
        _
      $region51: #{tpu_custom_call.1} parent=48 // loop_header
        %s59 = sphi 0, %s63
        %p60 = scmp.ge.s32.totalorder %s59, 1
        %s64 = sphi %s48, %s48
        %s65 = sphi [#allocation2], [#allocation2]
      $region52: #{tpu_custom_call.1} parent=48 // loop_header_branch
        %62 = sbr.rel (%p60) target = $region56
      $region53: #{tpu_custom_call.1} parent=48 // loop_body
        %v66 = vld [vmem:[%s64] sm:%s57]
        %67 = vst [vmem:[%s65] sm:%s57] %v66
      $region54: #{tpu_custom_call.1} parent=48 // loop_footer
        %s63 = sadd.s32 1, %s59
      $region55: #{tpu_custom_call.1} parent=48 // loop_footer_branch
        %58 = sbr.rel target = $region51
      $region56: #{tpu_custom_call.1} parent=48 // loop_exit
        _
    $region49: #{tpu_custom_call.1} parent=1 // pred_fallthru
      _
    // Predicated region
    $region72: #{tpu_custom_call.1} parent=1 // pred_check
      _
    $region73: #{tpu_custom_call.1} parent=1 // pred_check_branch
      %99 = sbr.rel (0) target = $region75
    $region74: #{tpu_custom_call.1} parent=1 // pred_region
      %100 = vsyncadd [#allocation3], 768
    $region75: #{tpu_custom_call.1} parent=1 // pred_fallthru
      _
    %s101 = smul.u32 48, 1
    %s102 = sshll.u32 %s101, 4
    %103 = dma.done [#allocation3], %s102
    %v104 = vld [vmem:[#allocation2] sm:$0xff]
    %v105 = vld [vmem:[#allocation2 + $0x8] sm:$0xff]
    %v106 = vld [vmem:[#allocation2 + $0x10] sm:$0xff]
    %v107 = vld [vmem:[#allocation2 + $0x18] sm:$0xff]
    %v108 = vld [vmem:[#allocation2 + $0x20] sm:$0xff]
    %v109 = vld [vmem:[#allocation2 + $0x28] sm:$0xff]
    %v110 = vmul.f32 %v104, %v104
    %v111 = vmul.f32 %v105, %v105
    %v112 = vmul.f32 %v106, %v106
    %v113 = vmul.f32 %v107, %v107
    %v114 = vmul.f32 %v108, %v108
    %v115 = vmul.f32 %v109, %v109
    %v116 = vld [vmem:[%s1] sm:$0x1]
    %v117 = vrot.slane %v110, 7
    %v118 = vrot.slane %v111, 7
    %v119 = vrot.slane %v112, 7
    %v120 = vrot.slane %v113, 7
    %v121 = vrot.slane %v114, 7
    %v122 = vrot.slane %v115, 7
    %v123 = vlaneseq
    %v124 = vshrl.u32 %v123, 7
    %vm125 = vcmp.lt.s32.totalorder %v124, 1
    %v126 = vsel %vm125, %v121, %v122
    %v127 = vsel %vm125, %v120, %v121
    %v128 = vsel %vm125, %v119, %v120
    %v129 = vsel %vm125, %v118, %v119
    %v130 = vsel %vm125, %v117, %v118
    %v131 = vsel %vm125, %v122, %v117
    %v133 = vlaneseq
    %v134 = vshrl.u32 %v133, 7
    %v135 = vsub.s32 0, %v134
    %v136 = vrot.slane %v116, %v135
    %v138 = vmul.f32 %v136, %v131
    %v139 = vmul.f32 %v136, %v130
    %v140 = vmul.f32 %v136, %v129
    %v141 = vmul.f32 %v136, %v128
    %v142 = vmul.f32 %v136, %v127
    %v143 = vmul.f32 %v136, %v126
    %v144 = vadd.f32 %v110, %v138
    %v145 = vadd.f32 %v111, %v139
    %v146 = vadd.f32 %v112, %v140
    %v147 = vadd.f32 %v113, %v141
    %v148 = vadd.f32 %v114, %v142
    %v149 = vadd.f32 %v115, %v143
    %v150 = vmul.f32 %v116, %v116
    %v151 = vrot.slane %v144, 6
    %v152 = vrot.slane %v145, 6
    %v153 = vrot.slane %v146, 6
    %v154 = vrot.slane %v147, 6
    %v155 = vrot.slane %v148, 6
    %v156 = vrot.slane %v149, 6
    %vm157 = vcmp.lt.s32.totalorder %v124, 2
    %v158 = vsel %vm157, %v155, %v156
    %v159 = vsel %vm157, %v154, %v155
    %v160 = vsel %vm157, %v153, %v154
    %v161 = vsel %vm157, %v152, %v153
    %v162 = vsel %vm157, %v151, %v152
    %v163 = vsel %vm157, %v156, %v151
    %v165 = vlaneseq
    %v166 = vshrl.u32 %v165, 7
    %v167 = vsub.s32 0, %v166
    %v168 = vrot.slane %v150, %v167
    %v170 = vmul.f32 %v168, %v163
    %v171 = vmul.f32 %v168, %v162
    %v172 = vmul.f32 %v168, %v161
    %v173 = vmul.f32 %v168, %v160
    %v174 = vmul.f32 %v168, %v159
    %v175 = vmul.f32 %v168, %v158
    %v176 = vadd.f32 %v144, %v170
    %v177 = vadd.f32 %v145, %v171
    %v178 = vadd.f32 %v146, %v172
    %v179 = vadd.f32 %v147, %v173
    %v180 = vadd.f32 %v148, %v174
    %v181 = vadd.f32 %v149, %v175
    %v182 = vmul.f32 %v150, %v150
    %v183 = vrot.slane %v176, 4
    %v184 = vrot.slane %v177, 4
    %v185 = vrot.slane %v178, 4
    %v186 = vrot.slane %v179, 4
    %v187 = vrot.slane %v180, 4
    %v188 = vrot.slane %v181, 4
    %vm189 = vcmp.lt.s32.totalorder %v124, 4
    %v190 = vsel %vm189, %v187, %v188
    %v191 = vsel %vm189, %v186, %v187
    %v192 = vsel %vm189, %v185, %v186
    %v193 = vsel %vm189, %v184, %v185
    %v194 = vsel %vm189, %v183, %v184
    %v196 = vlaneseq
    %v197 = vshrl.u32 %v196, 7
    %v198 = vsub.s32 0, %v197
    %v199 = vrot.slane %v182, %v198
    %v201 = vmul.f32 %v199, %v194
    %v202 = vmul.f32 %v199, %v193
    %v203 = vmul.f32 %v199, %v192
    %v204 = vmul.f32 %v199, %v191
    %v205 = vmul.f32 %v199, %v190
    %v206 = vadd.f32 %v177, %v201
    %v207 = vadd.f32 %v178, %v202
    %v208 = vadd.f32 %v179, %v203
    %v209 = vadd.f32 %v180, %v204
    %v210 = vadd.f32 %v181, %v205
    %v211 = vmul.f32 %v182, %v182
    %v213 = vlaneseq
    %v214 = vshrl.u32 %v213, 7
    %v215 = vsub.s32 0, %v214
    %v216 = vrot.slane %v211, %v215
    %v218 = vmul.f32 %v216, %v176
    %v219 = vmul.f32 %v216, %v177
    %v220 = vmul.f32 %v216, %v178
    %v221 = vmul.f32 %v216, %v179
    %v222 = vmul.f32 %v216, %v180
    %v223 = vadd.f32 %v206, %v218
    %v224 = vadd.f32 %v207, %v219
    %v225 = vadd.f32 %v208, %v220
    %v226 = vadd.f32 %v209, %v221
    %v227 = vadd.f32 %v210, %v222
    %v228 = vmul.f32 %v182, %v211
    %v229 = vrot.slane %v144, 4
    %v230 = vrot.slane %v145, 4
    %v231 = vrot.slane %v146, 4
    %v232 = vrot.slane %v147, 4
    %v233 = vrot.slane %v148, 4
    %v234 = vrot.slane %v149, 4
    %v235 = vsel %vm189, %v232, %v233
    %v236 = vsel %vm189, %v231, %v232
    %v237 = vsel %vm189, %v230, %v231
    %v238 = vsel %vm189, %v229, %v230
    %v239 = vsel %vm189, %v234, %v229
    %v241 = vlaneseq
    %v242 = vshrl.u32 %v241, 7
    %v243 = vsub.s32 0, %v242
    %v244 = vrot.slane %v228, %v243
    %v246 = vmul.f32 %v244, %v239
    %v247 = vmul.f32 %v244, %v238
    %v248 = vmul.f32 %v244, %v237
    %v249 = vmul.f32 %v244, %v236
    %v250 = vmul.f32 %v244, %v235
    %v251 = vadd.f32 %v223, %v246
    %v252 = vadd.f32 %v224, %v247
    %v253 = vadd.f32 %v225, %v248
    %v254 = vadd.f32 %v226, %v249
    %v255 = vadd.f32 %v227, %v250
    %v256 = vmul.f32 %v150, %v182
    %v257 = vmul.f32 %v256, %v211
    %v258 = vrot.slane %v110, 2
    %v259 = vrot.slane %v111, 2
    %v260 = vrot.slane %v112, 2
    %v261 = vrot.slane %v113, 2
    %v262 = vrot.slane %v114, 2
    %v263 = vrot.slane %v115, 2
    %vm264 = vcmp.lt.s32.totalorder %v124, 6
    %v265 = vsel %vm264, %v261, %v262
    %v266 = vsel %vm264, %v260, %v261
    %v267 = vsel %vm264, %v259, %v260
    %v268 = vsel %vm264, %v258, %v259
    %v269 = vsel %vm264, %v263, %v258
    %v271 = vlaneseq
    %v272 = vshrl.u32 %v271, 7
    %v273 = vsub.s32 0, %v272
    %v274 = vrot.slane %v257, %v273
    %v276 = vmul.f32 %v274, %v269
    %v277 = vmul.f32 %v274, %v268
    %v278 = vmul.f32 %v274, %v267
    %v279 = vmul.f32 %v274, %v266
    %v280 = vmul.f32 %v274, %v265
    %v281 = vadd.f32 %v251, %v276
    %v282 = vadd.f32 %v252, %v277
    %v283 = vadd.f32 %v253, %v278
    %v284 = vadd.f32 %v254, %v279
    %v285 = vadd.f32 %v255, %v280
    %v286 = vrot.slane %v281, 7
    %v287 = vrot.slane %v282, 7
    %v288 = vrot.slane %v283, 7
    %v289 = vrot.slane %v284, 7
    %v290 = vrot.slane %v285, 7
    %v291 = vsel %vm125, %v289, %v290
    %v292 = vsel %vm125, %v288, %v289
    %v293 = vsel %vm125, %v287, %v288
    %v294 = vsel %vm125, %v286, %v287
    %v295 = vld [vmem:[%s3] sm:$0x1]
    %v296 = vld [vmem:[%s2] sm:$0x1]
    %v298 = vlaneseq
    %v299 = vshrl.u32 %v298, 7
    %v300 = vsub.s32 0, %v299
    %v301 = vrot.slane %v296, %v300
    %v303 = vmul.f32 %v301, %v294
    %v304 = vmul.f32 %v301, %v293
    %v305 = vmul.f32 %v301, %v292
    %v306 = vmul.f32 %v301, %v291
    %v308 = vlaneseq
    %v309 = vshrl.u32 %v308, 7
    %v310 = vsub.s32 0, %v309
    %v311 = vrot.slane %v295, %v310
    %v313 = vadd.f32 %v311, %v303
    %v314 = vadd.f32 %v311, %v304
    %v315 = vadd.f32 %v311, %v305
    %v316 = vadd.f32 %v311, %v306
    %v317 = vrsqrt.pop %v313
    %v318 = vrsqrt.pop %v314
    %v319 = vrsqrt.pop %v315
    %v320 = vrsqrt.pop %v316
    %v321 = vmul.f32 %v106, %v317
    %v322 = vmul.f32 %v107, %v318
    %v323 = vmul.f32 %v108, %v319
    %v324 = vmul.f32 %v109, %v320
    %v325 = vmul.f32 %v315, %v319
    %v326 = vmul.f32 %v316, %v320
    %s327 = sld [smem:[#allocation4]]
    %s328 = sld [smem:[#allocation4 + $0x1]]
    %v329 = vld [vmem:[%s6] sm:$0xff]
    %v330 = vld [vmem:[%s6 + $0x8] sm:$0xff]
    %v331 = vmul.f32 %v321, %v321
    %v332 = vmul.f32 %v322, %v322
    %v333 = vmul.f32 %v323, %v323
    %v334 = vmul.f32 %v324, %v324
    %vm335 = vcmask 261120
    %v337 = vsel %vm335, %v329, 0
    %v340 = vsel %vm335, %v330, 0
    %342 = vmatprep.subr.mxu0 0.0
    %343 = vmatpush1.msra.mxu0 %v331
    %344 = vmatprep.subr.mxu0 0.0
    %345 = vmatpush1.msra.mxu0 %v332
    %346 = vmatprep.subr.mxu0 0.0
    %347 = vmatpush1.msra.mxu0 %v333
    %348 = vmatprep.subr.mxu0 0.0
    %349 = vmatpush1.msra.mxu0 %v334
    %350 = vmatprep.subr.mxu0 0.0
    %351 = vmatpush1.msra.mxu0 0.0
    %352 = vmatprep.subr.mxu0 0.0
    %353 = vmatpush1.msra.mxu0 0.0
    %354 = vmatprep.subr.mxu0 0.0
    %355 = vmatpush1.msra.mxu0 0.0
    %356 = vmatprep.subr.mxu0 0.0
    %357 = vmatpush1.msra.mxu0 0.0
    %358 = vmatprep.subr.mxu0 0.0
    %359 = vmatpush1.msra.mxu0 0.0
    %360 = vmatprep.subr.mxu0 0.0
    %361 = vmatpush1.msra.mxu0 0.0
    %362 = vmatprep.subr.mxu0 0.0
    %363 = vmatpush1.msra.mxu0 0.0
    %364 = vmatprep.subr.mxu0 0.0
    %365 = vmatpush1.msra.mxu0 0.0
    %366 = vmatprep.subr.mxu0 0.0
    %367 = vmatpush1.msra.mxu0 0.0
    %368 = vmatprep.subr.mxu0 0.0
    %369 = vmatpush1.msra.mxu0 0.0
    %370 = vmatprep.subr.mxu0 0.0
    %371 = vmatpush1.msra.mxu0 0.0
    %372 = vmatprep.subr.mxu0 0.0
    %373 = vmatpush1.msra.mxu0 0.0
    %374 = vmatprep.subr.mxu0 0.0
    %375 = vmatpush1.msra.mxu0 0.0
    %376 = vmatprep.subr.mxu0 0.0
    %377 = vmatpush1.msra.mxu0 0.0
    %378 = vmatprep.subr.mxu0 0.0
    %379 = vmatpush1.msra.mxu0 0.0
    %380 = vmatprep.subr.mxu0 0.0
    %381 = vmatpush1.msra.mxu0 0.0
    %382 = vmatprep.subr.mxu0 0.0
    %383 = vmatpush1.msra.mxu0 0.0
    %384 = vmatprep.subr.mxu0 0.0
    %385 = vmatpush1.msra.mxu0 0.0
    %386 = vmatprep.subr.mxu0 0.0
    %387 = vmatpush1.msra.mxu0 0.0
    %388 = vmatprep.subr.mxu0 0.0
    %389 = vmatpush1.msra.mxu0 0.0
    %390 = vmatprep.subr.mxu0 0.0
    %391 = vmatpush1.msra.mxu0 0.0
    %392 = vmatprep.subr.mxu0 0.0
    %393 = vmatpush1.msra.mxu0 0.0
    %394 = vmatprep.subr.mxu0 0.0
    %395 = vmatpush1.msra.mxu0 0.0
    %396 = vmatprep.subr.mxu0 0.0
    %397 = vmatpush1.msra.mxu0 0.0
    %398 = vmatprep.subr.mxu0 0.0
    %399 = vmatpush1.msra.mxu0 0.0
    %400 = vmatprep.subr.mxu0 0.0
    %401 = vmatpush1.msra.mxu0 0.0
    %402 = vmatprep.subr.mxu0 0.0
    %403 = vmatpush1.msra.mxu0 0.0
    %404 = vmatprep.subr.mxu0 0.0
    %405 = vmatpush1.msra.mxu0 0.0
    %406 = vmatprep.mubr.f32.mxu0 0.0
    %407 = vmatmul.mubr.f32.gmra.mrb[0].mxu0 %v337
    %v408 = vpop.f32.mrb[0].mxu0
    %v409 = vadd.f32 0.0, %v408
    %v410 = vpop.f32.mrb[0].mxu0
    %411 = vmatprep.mubr.f32.mxu0 0.0
    %412 = vmatmul.mubr.f32.gmra.mrb[0].mxu0 %v340
    %v413 = vpop.f32.mrb[0].mxu0
    %v414 = vadd.f32 0.0, %v413
    %v415 = vpop.f32.mrb[0].mxu0
    %416 = vdwg.mxu0
    %v417 = vld [vmem:[%s5] sm:$0x1]
    %v418 = vstv %s328
    %v419 = vmul.f32 %v418, %v417
    %v420 = vstv %s327
    %v421 = vmul.f32 %v420, %v409
    %v422 = vmul.f32 %v420, %v414
    %v424 = vlaneseq
    %v425 = vshrl.u32 %v424, 7
    %v426 = vsub.s32 0, %v425
    %v427 = vrot.slane %v419, %v426
    %v429 = vadd.f32 %v427, %v421
    %v430 = vadd.f32 %v427, %v422
    %v431 = vrsqrt.pop %v429
    %v432 = vrsqrt.pop %v430
    %v433 = vmul.f32 %v325, %v431
    %v434 = vmul.f32 %v326, %v432
    %v435 = vld [vmem:[%s7] sm:$0xff]
    %v436 = vld [vmem:[%s8] sm:$0xff]
    %vm437 = vcmask 64512
    %v439 = vsel %vm437, %v321, 0
    %v442 = vsel %vm437, %v322, 0
    %v445 = vsel %vm437, %v323, 0
    %v448 = vsel %vm437, %v324, 0
    %450 = vmatprep.subr.mxu0 0.0
    %451 = vmatpush1.msra.mxu0 %v435
    %452 = vmatprep.subr.mxu0 0.0
    %453 = vmatpush1.msra.mxu0 0.0
    %454 = vmatprep.subr.mxu0 0.0
    %455 = vmatpush1.msra.mxu0 0.0
    %456 = vmatprep.subr.mxu0 0.0
    %457 = vmatpush1.msra.mxu0 0.0
    %458 = vmatprep.subr.mxu0 0.0
    %459 = vmatpush1.msra.mxu0 0.0
    %460 = vmatprep.subr.mxu0 0.0
    %461 = vmatpush1.msra.mxu0 0.0
    %462 = vmatprep.subr.mxu0 0.0
    %463 = vmatpush1.msra.mxu0 0.0
    %464 = vmatprep.subr.mxu0 0.0
    %465 = vmatpush1.msra.mxu0 0.0
    %466 = vmatprep.subr.mxu0 0.0
    %467 = vmatpush1.msra.mxu0 0.0
    %468 = vmatprep.subr.mxu0 0.0
    %469 = vmatpush1.msra.mxu0 0.0
    %470 = vmatprep.subr.mxu0 0.0
    %471 = vmatpush1.msra.mxu0 0.0
    %472 = vmatprep.subr.mxu0 0.0
    %473 = vmatpush1.msra.mxu0 0.0
    %474 = vmatprep.subr.mxu0 0.0
    %475 = vmatpush1.msra.mxu0 0.0
    %476 = vmatprep.subr.mxu0 0.0
    %477 = vmatpush1.msra.mxu0 0.0
    %478 = vmatprep.subr.mxu0 0.0
    %479 = vmatpush1.msra.mxu0 0.0
    %480 = vmatprep.subr.mxu0 0.0
    %481 = vmatpush1.msra.mxu0 0.0
    %482 = vmatprep.subr.mxu0 0.0
    %483 = vmatpush1.msra.mxu0 0.0
    %484 = vmatprep.subr.mxu0 0.0
    %485 = vmatpush1.msra.mxu0 0.0
    %486 = vmatprep.subr.mxu0 0.0
    %487 = vmatpush1.msra.mxu0 0.0
    %488 = vmatprep.subr.mxu0 0.0
    %489 = vmatpush1.msra.mxu0 0.0
    %490 = vmatprep.subr.mxu0 0.0
    %491 = vmatpush1.msra.mxu0 0.0
    %492 = vmatprep.subr.mxu0 0.0
    %493 = vmatpush1.msra.mxu0 0.0
    %494 = vmatprep.subr.mxu0 0.0
    %495 = vmatpush1.msra.mxu0 0.0
    %496 = vmatprep.subr.mxu0 0.0
    %497 = vmatpush1.msra.mxu0 0.0
    %498 = vmatprep.subr.mxu0 0.0
    %499 = vmatpush1.msra.mxu0 0.0
    %500 = vmatprep.subr.mxu0 0.0
    %501 = vmatpush1.msra.mxu0 0.0
    %502 = vmatprep.subr.mxu0 0.0
    %503 = vmatpush1.msra.mxu0 0.0
    %504 = vmatprep.subr.mxu0 0.0
    %505 = vmatpush1.msra.mxu0 0.0
    %506 = vmatprep.subr.mxu0 0.0
    %507 = vmatpush1.msra.mxu0 0.0
    %508 = vmatprep.subr.mxu0 0.0
    %509 = vmatpush1.msra.mxu0 0.0
    %510 = vmatprep.subr.mxu0 0.0
    %511 = vmatpush1.msra.mxu0 0.0
    %512 = vmatprep.subr.mxu0 0.0
    %513 = vmatpush1.msra.mxu0 0.0
    %514 = vmatprep.mubr.f32.mxu0 0.0
    %515 = vmatmul.mubr.f32.gmra.mrb[0].mxu0 %v439
    %v516 = vpop.f32.mrb[0].mxu0
    %v517 = vadd.f32 0.0, %v516
    %v518 = vpop.f32.mrb[0].mxu0
    %519 = vmatprep.mubr.f32.mxu0 0.0
    %520 = vmatmul.mubr.f32.gmra.mrb[0].mxu0 %v442
    %v521 = vpop.f32.mrb[0].mxu0
    %v522 = vadd.f32 0.0, %v521
    %v523 = vpop.f32.mrb[0].mxu0
    %524 = vmatprep.mubr.f32.mxu0 0.0
    %525 = vmatmul.mubr.f32.gmra.mrb[0].mxu0 %v445
    %v526 = vpop.f32.mrb[0].mxu0
    %v527 = vadd.f32 0.0, %v526
    %v528 = vpop.f32.mrb[0].mxu0
    %529 = vmatprep.mubr.f32.mxu0 0.0
    %530 = vmatmul.mubr.f32.gmra.mrb[0].mxu0 %v448
    %v531 = vpop.f32.mrb[0].mxu0
    %v532 = vadd.f32 0.0, %v531
    %v533 = vpop.f32.mrb[0].mxu0
    %534 = vdwg.mxu0
    %535 = vmatprep.subr.mxu0 0.0
    %536 = vmatpush1.msra.mxu0 %v436
    %537 = vmatprep.subr.mxu0 0.0
    %538 = vmatpush1.msra.mxu0 0.0
    %539 = vmatprep.subr.mxu0 0.0
    %540 = vmatpush1.msra.mxu0 0.0
    %541 = vmatprep.subr.mxu0 0.0
    %542 = vmatpush1.msra.mxu0 0.0
    %543 = vmatprep.subr.mxu0 0.0
    %544 = vmatpush1.msra.mxu0 0.0
    %545 = vmatprep.subr.mxu0 0.0
    %546 = vmatpush1.msra.mxu0 0.0
    %547 = vmatprep.subr.mxu0 0.0
    %548 = vmatpush1.msra.mxu0 0.0
    %549 = vmatprep.subr.mxu0 0.0
    %550 = vmatpush1.msra.mxu0 0.0
    %551 = vmatprep.subr.mxu0 0.0
    %552 = vmatpush1.msra.mxu0 0.0
    %553 = vmatprep.subr.mxu0 0.0
    %554 = vmatpush1.msra.mxu0 0.0
    %555 = vmatprep.subr.mxu0 0.0
    %556 = vmatpush1.msra.mxu0 0.0
    %557 = vmatprep.subr.mxu0 0.0
    %558 = vmatpush1.msra.mxu0 0.0
    %559 = vmatprep.subr.mxu0 0.0
    %560 = vmatpush1.msra.mxu0 0.0
    %561 = vmatprep.subr.mxu0 0.0
    %562 = vmatpush1.msra.mxu0 0.0
    %563 = vmatprep.subr.mxu0 0.0
    %564 = vmatpush1.msra.mxu0 0.0
    %565 = vmatprep.subr.mxu0 0.0
    %566 = vmatpush1.msra.mxu0 0.0
    %567 = vmatprep.subr.mxu0 0.0
    %568 = vmatpush1.msra.mxu0 0.0
    %569 = vmatprep.subr.mxu0 0.0
    %570 = vmatpush1.msra.mxu0 0.0
    %571 = vmatprep.subr.mxu0 0.0
    %572 = vmatpush1.msra.mxu0 0.0
    %573 = vmatprep.subr.mxu0 0.0
    %574 = vmatpush1.msra.mxu0 0.0
    %575 = vmatprep.subr.mxu0 0.0
    %576 = vmatpush1.msra.mxu0 0.0
    %577 = vmatprep.subr.mxu0 0.0
    %578 = vmatpush1.msra.mxu0 0.0
    %579 = vmatprep.subr.mxu0 0.0
    %580 = vmatpush1.msra.mxu0 0.0
    %581 = vmatprep.subr.mxu0 0.0
    %582 = vmatpush1.msra.mxu0 0.0
    %583 = vmatprep.subr.mxu0 0.0
    %584 = vmatpush1.msra.mxu0 0.0
    %585 = vmatprep.subr.mxu0 0.0
    %586 = vmatpush1.msra.mxu0 0.0
    %587 = vmatprep.subr.mxu0 0.0
    %588 = vmatpush1.msra.mxu0 0.0
    %589 = vmatprep.subr.mxu0 0.0
    %590 = vmatpush1.msra.mxu0 0.0
    %591 = vmatprep.subr.mxu0 0.0
    %592 = vmatpush1.msra.mxu0 0.0
    %593 = vmatprep.subr.mxu0 0.0
    %594 = vmatpush1.msra.mxu0 0.0
    %595 = vmatprep.subr.mxu0 0.0
    %596 = vmatpush1.msra.mxu0 0.0
    %597 = vmatprep.subr.mxu0 0.0
    %598 = vmatpush1.msra.mxu0 0.0
    %599 = vmatprep.mubr.f32.mxu0 0.0
    %600 = vmatmul.mubr.f32.gmra.mrb[0].mxu0 %v439
    %v601 = vpop.f32.mrb[0].mxu0
    %v602 = vadd.f32 0.0, %v601
    %v603 = vpop.f32.mrb[0].mxu0
    %604 = vmatprep.mubr.f32.mxu0 0.0
    %605 = vmatmul.mubr.f32.gmra.mrb[0].mxu0 %v442
    %v606 = vpop.f32.mrb[0].mxu0
    %v607 = vadd.f32 0.0, %v606
    %v608 = vpop.f32.mrb[0].mxu0
    %609 = vmatprep.mubr.f32.mxu0 0.0
    %610 = vmatmul.mubr.f32.gmra.mrb[0].mxu0 %v445
    %v611 = vpop.f32.mrb[0].mxu0
    %v612 = vadd.f32 0.0, %v611
    %v613 = vpop.f32.mrb[0].mxu0
    %614 = vmatprep.mubr.f32.mxu0 0.0
    %615 = vmatmul.mubr.f32.gmra.mrb[0].mxu0 %v448
    %v616 = vpop.f32.mrb[0].mxu0
    %v617 = vadd.f32 0.0, %v616
    %v618 = vpop.f32.mrb[0].mxu0
    %619 = vdwg.mxu0
    %v620 = vmul.f32 %v517, %v602
    %v621 = vmul.f32 %v522, %v607
    %v622 = vmul.f32 %v527, %v612
    %v623 = vmul.f32 %v532, %v617
    %624 = vmatprep.subr.mxu0 0.0
    %625 = vmatpush1.msra.mxu0 %v620
    %626 = vmatprep.subr.mxu0 0.0
    %627 = vmatpush1.msra.mxu0 %v621
    %628 = vmatprep.subr.mxu0 0.0
    %629 = vmatpush1.msra.mxu0 %v622
    %630 = vmatprep.subr.mxu0 0.0
    %631 = vmatpush1.msra.mxu0 %v623
    %632 = vmatprep.subr.mxu0 0.0
    %633 = vmatpush1.msra.mxu0 0.0
    %634 = vmatprep.subr.mxu0 0.0
    %635 = vmatpush1.msra.mxu0 0.0
    %636 = vmatprep.subr.mxu0 0.0
    %637 = vmatpush1.msra.mxu0 0.0
    %638 = vmatprep.subr.mxu0 0.0
    %639 = vmatpush1.msra.mxu0 0.0
    %640 = vmatprep.subr.mxu0 0.0
    %641 = vmatpush1.msra.mxu0 0.0
    %642 = vmatprep.subr.mxu0 0.0
    %643 = vmatpush1.msra.mxu0 0.0
    %644 = vmatprep.subr.mxu0 0.0
    %645 = vmatpush1.msra.mxu0 0.0
    %646 = vmatprep.subr.mxu0 0.0
    %647 = vmatpush1.msra.mxu0 0.0
    %648 = vmatprep.subr.mxu0 0.0
    %649 = vmatpush1.msra.mxu0 0.0
    %650 = vmatprep.subr.mxu0 0.0
    %651 = vmatpush1.msra.mxu0 0.0
    %652 = vmatprep.subr.mxu0 0.0
    %653 = vmatpush1.msra.mxu0 0.0
    %654 = vmatprep.subr.mxu0 0.0
    %655 = vmatpush1.msra.mxu0 0.0
    %656 = vmatprep.subr.mxu0 0.0
    %657 = vmatpush1.msra.mxu0 0.0
    %658 = vmatprep.subr.mxu0 0.0
    %659 = vmatpush1.msra.mxu0 0.0
    %660 = vmatprep.subr.mxu0 0.0
    %661 = vmatpush1.msra.mxu0 0.0
    %662 = vmatprep.subr.mxu0 0.0
    %663 = vmatpush1.msra.mxu0 0.0
    %664 = vmatprep.subr.mxu0 0.0
    %665 = vmatpush1.msra.mxu0 0.0
    %666 = vmatprep.subr.mxu0 0.0
    %667 = vmatpush1.msra.mxu0 0.0
    %668 = vmatprep.subr.mxu0 0.0
    %669 = vmatpush1.msra.mxu0 0.0
    %670 = vmatprep.subr.mxu0 0.0
    %671 = vmatpush1.msra.mxu0 0.0
    %672 = vmatprep.subr.mxu0 0.0
    %673 = vmatpush1.msra.mxu0 0.0
    %674 = vmatprep.subr.mxu0 0.0
    %675 = vmatpush1.msra.mxu0 0.0
    %676 = vmatprep.subr.mxu0 0.0
    %677 = vmatpush1.msra.mxu0 0.0
    %678 = vmatprep.subr.mxu0 0.0
    %679 = vmatpush1.msra.mxu0 0.0
    %680 = vmatprep.subr.mxu0 0.0
    %681 = vmatpush1.msra.mxu0 0.0
    %682 = vmatprep.subr.mxu0 0.0
    %683 = vmatpush1.msra.mxu0 0.0
    %684 = vmatprep.subr.mxu0 0.0
    %685 = vmatpush1.msra.mxu0 0.0
    %686 = vmatprep.subr.mxu0 0.0
    %687 = vmatpush1.msra.mxu0 0.0
    %688 = vmatprep.mubr.f32.mxu0 0.0
    %689 = vmatmul.mubr.f32.gmra.mrb[0].mxu0 %v337
    %v690 = vpop.f32.mrb[0].mxu0
    %v691 = vadd.f32 0.0, %v690
    %v692 = vpop.f32.mrb[0].mxu0
    %693 = vmatprep.mubr.f32.mxu0 0.0
    %694 = vmatmul.mubr.f32.gmra.mrb[0].mxu0 %v340
    %v695 = vpop.f32.mrb[0].mxu0
    %v696 = vadd.f32 0.0, %v695
    %v697 = vpop.f32.mrb[0].mxu0
    %698 = vdwg.mxu0
    %v699 = vld [vmem:[%s4] sm:$0x1]
    %v700 = vmul.f32 %v418, %v699
    %v701 = vmul.f32 %v420, %v691
    %v702 = vmul.f32 %v420, %v696
    %v704 = vlaneseq
    %v705 = vshrl.u32 %v704, 7
    %v706 = vsub.s32 0, %v705
    %v707 = vrot.slane %v700, %v706
    %v709 = vadd.f32 %v707, %v701
    %v710 = vadd.f32 %v707, %v702
    %v712 = vsel %vm437, %v433, 0
    %v715 = vsel %vm437, %v434, 0
    %717 = vmatprep.subr.mxu0 0.0
    %718 = vmatpush1.msra.mxu0 %v435
    %719 = vmatprep.subr.mxu0 0.0
    %720 = vmatpush1.msra.mxu0 0.0
    %721 = vmatprep.subr.mxu0 0.0
    %722 = vmatpush1.msra.mxu0 0.0
    %723 = vmatprep.subr.mxu0 0.0
    %724 = vmatpush1.msra.mxu0 0.0
    %725 = vmatprep.subr.mxu0 0.0
    %726 = vmatpush1.msra.mxu0 0.0
    %727 = vmatprep.subr.mxu0 0.0
    %728 = vmatpush1.msra.mxu0 0.0
    %729 = vmatprep.subr.mxu0 0.0
    %730 = vmatpush1.msra.mxu0 0.0
    %731 = vmatprep.subr.mxu0 0.0
    %732 = vmatpush1.msra.mxu0 0.0
    %733 = vmatprep.subr.mxu0 0.0
    %734 = vmatpush1.msra.mxu0 0.0
    %735 = vmatprep.subr.mxu0 0.0
    %736 = vmatpush1.msra.mxu0 0.0
    %737 = vmatprep.subr.mxu0 0.0
    %738 = vmatpush1.msra.mxu0 0.0
    %739 = vmatprep.subr.mxu0 0.0
    %740 = vmatpush1.msra.mxu0 0.0
    %741 = vmatprep.subr.mxu0 0.0
    %742 = vmatpush1.msra.mxu0 0.0
    %743 = vmatprep.subr.mxu0 0.0
    %744 = vmatpush1.msra.mxu0 0.0
    %745 = vmatprep.subr.mxu0 0.0
    %746 = vmatpush1.msra.mxu0 0.0
    %747 = vmatprep.subr.mxu0 0.0
    %748 = vmatpush1.msra.mxu0 0.0
    %749 = vmatprep.subr.mxu0 0.0
    %750 = vmatpush1.msra.mxu0 0.0
    %751 = vmatprep.subr.mxu0 0.0
    %752 = vmatpush1.msra.mxu0 0.0
    %753 = vmatprep.subr.mxu0 0.0
    %754 = vmatpush1.msra.mxu0 0.0
    %755 = vmatprep.subr.mxu0 0.0
    %756 = vmatpush1.msra.mxu0 0.0
    %757 = vmatprep.subr.mxu0 0.0
    %758 = vmatpush1.msra.mxu0 0.0
    %759 = vmatprep.subr.mxu0 0.0
    %760 = vmatpush1.msra.mxu0 0.0
    %761 = vmatprep.subr.mxu0 0.0
    %762 = vmatpush1.msra.mxu0 0.0
    %763 = vmatprep.subr.mxu0 0.0
    %764 = vmatpush1.msra.mxu0 0.0
    %765 = vmatprep.subr.mxu0 0.0
    %766 = vmatpush1.msra.mxu0 0.0
    %767 = vmatprep.subr.mxu0 0.0
    %768 = vmatpush1.msra.mxu0 0.0
    %769 = vmatprep.subr.mxu0 0.0
    %770 = vmatpush1.msra.mxu0 0.0
    %771 = vmatprep.subr.mxu0 0.0
    %772 = vmatpush1.msra.mxu0 0.0
    %773 = vmatprep.subr.mxu0 0.0
    %774 = vmatpush1.msra.mxu0 0.0
    %775 = vmatprep.subr.mxu0 0.0
    %776 = vmatpush1.msra.mxu0 0.0
    %777 = vmatprep.subr.mxu0 0.0
    %778 = vmatpush1.msra.mxu0 0.0
    %779 = vmatprep.subr.mxu0 0.0
    %780 = vmatpush1.msra.mxu0 0.0
    %781 = vmatprep.mubr.f32.mxu0 0.0
    %782 = vmatmul.mubr.f32.gmra.mrb[0].mxu0 %v712
    %v783 = vpop.f32.mrb[0].mxu0
    %v784 = vadd.f32 0.0, %v783
    %v785 = vpop.f32.mrb[0].mxu0
    %786 = vmatprep.mubr.f32.mxu0 0.0
    %787 = vmatmul.mubr.f32.gmra.mrb[0].mxu0 %v715
    %v788 = vpop.f32.mrb[0].mxu0
    %v789 = vadd.f32 0.0, %v788
    %v790 = vpop.f32.mrb[0].mxu0
    %791 = vdwg.mxu0
    %792 = vmatprep.subr.mxu0 0.0
    %793 = vmatpush1.msra.mxu0 %v436
    %794 = vmatprep.subr.mxu0 0.0
    %795 = vmatpush1.msra.mxu0 0.0
    %796 = vmatprep.subr.mxu0 0.0
    %797 = vmatpush1.msra.mxu0 0.0
    %798 = vmatprep.subr.mxu0 0.0
    %799 = vmatpush1.msra.mxu0 0.0
    %800 = vmatprep.subr.mxu0 0.0
    %801 = vmatpush1.msra.mxu0 0.0
    %802 = vmatprep.subr.mxu0 0.0
    %803 = vmatpush1.msra.mxu0 0.0
    %804 = vmatprep.subr.mxu0 0.0
    %805 = vmatpush1.msra.mxu0 0.0
    %806 = vmatprep.subr.mxu0 0.0
    %807 = vmatpush1.msra.mxu0 0.0
    %808 = vmatprep.subr.mxu0 0.0
    %809 = vmatpush1.msra.mxu0 0.0
    %810 = vmatprep.subr.mxu0 0.0
    %811 = vmatpush1.msra.mxu0 0.0
    %812 = vmatprep.subr.mxu0 0.0
    %813 = vmatpush1.msra.mxu0 0.0
    %814 = vmatprep.subr.mxu0 0.0
    %815 = vmatpush1.msra.mxu0 0.0
    %816 = vmatprep.subr.mxu0 0.0
    %817 = vmatpush1.msra.mxu0 0.0
    %818 = vmatprep.subr.mxu0 0.0
    %819 = vmatpush1.msra.mxu0 0.0
    %820 = vmatprep.subr.mxu0 0.0
    %821 = vmatpush1.msra.mxu0 0.0
    %822 = vmatprep.subr.mxu0 0.0
    %823 = vmatpush1.msra.mxu0 0.0
    %824 = vmatprep.subr.mxu0 0.0
    %825 = vmatpush1.msra.mxu0 0.0
    %826 = vmatprep.subr.mxu0 0.0
    %827 = vmatpush1.msra.mxu0 0.0
    %828 = vmatprep.subr.mxu0 0.0
    %829 = vmatpush1.msra.mxu0 0.0
    %830 = vmatprep.subr.mxu0 0.0
    %831 = vmatpush1.msra.mxu0 0.0
    %832 = vmatprep.subr.mxu0 0.0
    %833 = vmatpush1.msra.mxu0 0.0
    %834 = vmatprep.subr.mxu0 0.0
    %835 = vmatpush1.msra.mxu0 0.0
    %836 = vmatprep.subr.mxu0 0.0
    %837 = vmatpush1.msra.mxu0 0.0
    %838 = vmatprep.subr.mxu0 0.0
    %839 = vmatpush1.msra.mxu0 0.0
    %840 = vmatprep.subr.mxu0 0.0
    %841 = vmatpush1.msra.mxu0 0.0
    %842 = vmatprep.subr.mxu0 0.0
    %843 = vmatpush1.msra.mxu0 0.0
    %844 = vmatprep.subr.mxu0 0.0
    %845 = vmatpush1.msra.mxu0 0.0
    %846 = vmatprep.subr.mxu0 0.0
    %847 = vmatpush1.msra.mxu0 0.0
    %848 = vmatprep.subr.mxu0 0.0
    %849 = vmatpush1.msra.mxu0 0.0
    %850 = vmatprep.subr.mxu0 0.0
    %851 = vmatpush1.msra.mxu0 0.0
    %852 = vmatprep.subr.mxu0 0.0
    %853 = vmatpush1.msra.mxu0 0.0
    %854 = vmatprep.subr.mxu0 0.0
    %855 = vmatpush1.msra.mxu0 0.0
    %856 = vmatprep.mubr.f32.mxu0 0.0
    %857 = vmatmul.mubr.f32.gmra.mrb[0].mxu0 %v712
    %v858 = vpop.f32.mrb[0].mxu0
    %v859 = vadd.f32 0.0, %v858
    %v860 = vpop.f32.mrb[0].mxu0
    %861 = vmatprep.mubr.f32.mxu0 0.0
    %862 = vmatmul.mubr.f32.gmra.mrb[0].mxu0 %v715
    %v863 = vpop.f32.mrb[0].mxu0
    %v864 = vadd.f32 0.0, %v863
    %v865 = vpop.f32.mrb[0].mxu0
    %866 = vdwg.mxu0
    %v867 = vmul.f32 %v709, %v784
    %v868 = vmul.f32 %v710, %v789
    %v869 = vmul.f32 %v867, %v859
    %v870 = vmul.f32 %v868, %v864
    %871 = vst [vmem:[#allocation7] sm:$0xff] %v869
    %872 = vst [vmem:[#allocation7 + $0x8] sm:$0xff] %v870
    // Predicated region
    $region76: #{tpu_custom_call.1} parent=1 // pred_check
      _
    $region77: #{tpu_custom_call.1} parent=1 // pred_check_branch
      %874 = sbr.rel (0) target = $region79
    $region78: #{tpu_custom_call.1} parent=1 // pred_region
      %s876 = ssub.s32 256, 256
      %877 = vsyncadd [#allocation5], %s876
      %s878 = sshll.u32 [#allocation7], 4
      %s879 = int_to_ptr.vmem [resolvable:$true] %s878
      %884 = dma.vmem_to_hbm [thread:$0]  %s879, 256, %s10, [#allocation5], 128, 128, 8
    $region79: #{tpu_custom_call.1} parent=1 // pred_fallthru
      _
    // Predicated region
    $region80: #{tpu_custom_call.1} parent=1 // pred_check
      _
    $region81: #{tpu_custom_call.1} parent=1 // pred_check_branch
      %886 = sbr.rel (0) target = $region83
    $region82: #{tpu_custom_call.1} parent=1 // pred_region
      %887 = dma.done [#allocation5], 256
    $region83: #{tpu_custom_call.1} parent=1 // pred_fallthru
      _
    %888 = vsyncpa [#allocation5], 1
    %889 = vsyncpa [#allocation6], 1
  %890 = vsyncmov [#allocation3]
  %s891 = vpop.sfrf %890
  %p892 = scmp.eq.s32.totalorder %s891, 0
  %p893 = pneg %p892
  %895 = shalt.err (%p893)

</llo_original>
